<compile_context>
chip_gen: v5e
topology: v5e:2x2
jax: 0.10.0
libtpu: 0.0.40
codegen_flags: <defaults>
</compile_context>

<pallas_src>
import functools

import jax
import jax.numpy as jnp
from jax.experimental import pallas as pl
from jax.experimental.pallas import tpu as pltpu


def _round_up(x: int, m: int) -> int:
    return ((x + m - 1) // m) * m


def _cdiv(a: int, b: int) -> int:
    return -(-a // b)


# ----------------------------------------------------------------------------- kernel
def _stack_kernel(x_ref, *refs, apply_relu, compute_dtype):
    """Fused MLP stack. refs = (w_0, b_0, ..., w_{L-1}, b_{L-1}, o_ref).

    w_l : (fin_l, fout_l) compute_dtype  (pre-transposed; previous layer's eval-BN folded in)
    b_l : (1, fout_l) f32                (bias, incl. folded BN shift of the previous layer)
    """
    o_ref = refs[-1]
    layer_refs = refs[:-1]
    n_layers = len(apply_relu)

    h = x_ref[...].astype(compute_dtype)
    for l in range(n_layers):
        w = layer_refs[2 * l][...]
        b = layer_refs[2 * l + 1][...]
        y = jnp.dot(h, w, preferred_element_type=jnp.float32) + b   # MXU, f32 accumulate
        if apply_relu[l]:
            y = jnp.maximum(y, 0.0)
        h = y.astype(compute_dtype) if l < n_layers - 1 else y
    o_ref[...] = h.astype(o_ref.dtype)


# ----------------------------------------------------------------------------- prep (one-time)
def prepare_params(params, compute_dtype=jnp.bfloat16):
    """Transpose weights, fold each inner layer's eval-mode BN affine into the NEXT layer's
    weight/bias (exact in eval mode since Dropout is identity), cast weights to compute_dtype."""
    num_layers = len(params)
    prepared = []
    prev_scale = prev_shift = None
    for i, layer in enumerate(params):
        w_t = jnp.asarray(layer["w"], jnp.float32).T                 # (fin, fout)
        b = jnp.asarray(layer["b"], jnp.float32)
        if prev_scale is not None:
            # (scale*r + shift) @ Wt + b == r @ (scale[:,None]*Wt) + (shift @ Wt + b)
            b = b + prev_shift @ w_t
            w_t = prev_scale[:, None] * w_t
        is_inner = i < num_layers - 1
        if is_inner and "bn_scale" in layer:
            prev_scale = jnp.asarray(layer["bn_scale"], jnp.float32)
            prev_shift = jnp.asarray(layer["bn_shift"], jnp.float32)
        else:
            prev_scale = prev_shift = None
        prepared.append({
            "w": w_t.astype(compute_dtype),
            "b": b.reshape(1, -1),
            "apply_relu": is_inner,
            "fin": int(w_t.shape[0]),
            "fout": int(w_t.shape[1]),
        })
    return prepared


def _vmem_estimate_bytes(tm, fin0, prepared, compute_dtype, out_itemsize, weight_bufs=2):
    """Conservative VMEM footprint estimate (Mosaic pads layouts to (8,128) tiles internally)."""
    cd = jnp.dtype(compute_dtype).itemsize
    pad_f = lambda f: _round_up(f, 128)
    tm_p = _round_up(tm, 8)
    est = 2 * tm_p * pad_f(fin0) * 4                                  # x window (f32), 2 bufs
    est += 2 * tm_p * pad_f(prepared[-1]["fout"]) * out_itemsize      # out window, 2 bufs
    for p in prepared:
        est += weight_bufs * (pad_f(p["fin"]) * pad_f(p["fout"]) * cd + pad_f(p["fout"]) * 4)
    max_f = max([pad_f(fin0)] + [pad_f(p["fout"]) for p in prepared])
    est += 4 * tm_p * max_f * 4                                       # activation temporaries
    return est


def _device_defaults():
    kind = jax.devices()[0].device_kind.lower()
    try:
        vmem_cap = int(pltpu.get_tpu_info().vmem_capacity_bytes)
    except Exception:
        vmem_cap = 128 * 1024 * 1024
    is_v5 = "v5" in kind
    two_tc = "v7" in kind                       # v7x: 2 TensorCores per chip
    tm_default = 128 if is_v5 else 256          # v5e MXU is 4x128^2; v6e/v7x are 2x256^2
    scoped_default = (16 if is_v5 else 32) * 1024 * 1024
    return tm_default, scoped_default, vmem_cap, two_tc


# ----------------------------------------------------------------------------- forward
def multi_layer_linear_forward(x, prepared, *, tm=None, compute_dtype=jnp.bfloat16,
                               out_dtype=jnp.float32):
    """Full MultiLayerLinear stack (eval mode) as a single fused Pallas kernel."""
    B, fin0 = x.shape
    assert fin0 == prepared[0]["fin"]
    fout_last = prepared[-1]["fout"]

    tm_default, scoped_default, vmem_cap, two_tc = _device_defaults()
    if tm is None:
        tm = tm_default

    # Balanced batch tiling (no round_up(B, tm) waste); on 2-TC chips create >= 2 tiles
    # when B allows so ("parallel",) shards the batch grid across both cores.
    num_m = max(1, _cdiv(B, tm))
    if two_tc and num_m == 1 and B >= 16:
        num_m = 2
    tm_eff = _round_up(_cdiv(B, num_m), 8)
    num_m = _cdiv(B, tm_eff)

    # Generation-aware VMEM budget: never request above ~75% of physical VMEM (~48 MiB on
    # v7x's 64 MiB); shrink the batch tile instead of over-requesting.
    cap = min((vmem_cap * 3) // 4, 100 * 1024 * 1024)
    out_isz = jnp.dtype(out_dtype).itemsize
    est = _vmem_estimate_bytes(tm_eff, fin0, prepared, compute_dtype, out_isz)
    while est > cap and tm_eff > 8:
        tm_eff = max(8, _round_up(tm_eff // 2, 8))
        num_m = _cdiv(B, tm_eff)
        est = _vmem_estimate_bytes(tm_eff, fin0, prepared, compute_dtype, out_isz)
    b_pad = num_m * tm_eff

    vmem_limit = None
    if est > scoped_default // 2:   # leave headroom under the scoped default before raising
        vmem_limit = int(min(max(int(1.5 * est), scoped_default), cap))

    x_in = x if b_pad == B else jnp.pad(x, ((0, b_pad - B), (0, 0)))

    apply_relu = tuple(p["apply_relu"] for p in prepared)
    kernel = functools.partial(_stack_kernel, apply_relu=apply_relu,
                               compute_dtype=compute_dtype)

    def build_and_run(single_buffer_params):
        # Constant index_map -> weight/bias blocks stay resident across batch tiles;
        # single-buffering (Buffered(1)) halves their resident VMEM (no 2nd pipeline buffer).
        pmode = {"pipeline_mode": pl.Buffered(1)} if single_buffer_params else {}
        in_specs = [pl.BlockSpec((tm_eff, fin0), lambda i: (i, 0))]
        inputs = [x_in]
        for p in prepared:
            in_specs.append(pl.BlockSpec((p["fin"], p["fout"]), lambda i: (0, 0), **pmode))
            in_specs.append(pl.BlockSpec((1, p["fout"]), lambda i: (0, 0), **pmode))
            inputs.append(p["w"])
            inputs.append(p["b"])
        call = pl.pallas_call(
            kernel,
            out_shape=jax.ShapeDtypeStruct((b_pad, fout_last), out_dtype),
            grid_spec=pltpu.PrefetchScalarGridSpec(
                num_scalar_prefetch=0,
                grid=(num_m,),
                in_specs=in_specs,
                out_specs=pl.BlockSpec((tm_eff, fout_last), lambda i: (i, 0)),
            ),
            compiler_params=pltpu.CompilerParams(
                dimension_semantics=("parallel",),
                vmem_limit_bytes=vmem_limit),
        )
        return jax.block_until_ready(call(*inputs))

    try:
        out = build_and_run(single_buffer_params=True)
    except Exception:
        # Fallback if this Pallas build rejects buffer_count=1 for resident blocks.
        out = build_and_run(single_buffer_params=False)

    return out if b_pad == B else out[:B]


# ----------------------------------------------------------------------------- params / reference
def init_multi_layer_linear_params(key, num_features, *, bias=True,
                                   batch_norm=True, bn_eps=1e-5):
    """Deterministic parameter init mirroring the shapes created in __init__ (eval mode)."""
    num_layers = len(num_features) - 1
    params = []
    for i in range(num_layers):
        fin, fout = num_features[i], num_features[i + 1]
        key, kw, kb, kg, kbeta = jax.random.split(key, 5)
        bound = 1.0 / jnp.sqrt(fin)
        w = jax.random.uniform(kw, (fout, fin), jnp.float32, -bound, bound)
        b = (jax.random.uniform(kb, (fout,), jnp.float32, -bound, bound)
             if bias else jnp.zeros((fout,), jnp.float32))
        layer = {"w": w, "b": b}
        if i < num_layers - 1 and batch_norm:
            # PyTorch BatchNorm1d defaults: gamma=1, beta=0, running_mean=0, running_var=1.
            # Perturb gamma/beta so the BN path is exercised nontrivially.
            gamma = 1.0 + 0.1 * jax.random.normal(kg, (fout,), jnp.float32)
            beta = 0.1 * jax.random.normal(kbeta, (fout,), jnp.float32)
            running_mean = jnp.zeros((fout,), jnp.float32)
            running_var = jnp.ones((fout,), jnp.float32)
            inv_std = 1.0 / jnp.sqrt(running_var + bn_eps)
            layer["bn_scale"] = gamma * inv_std
            layer["bn_shift"] = beta - running_mean * gamma * inv_std
        params.append(layer)
    return params


def multi_layer_linear_reference(x, params):
    """Pure-JAX f32 reference, PyTorch eval semantics: Linear -> ReLU -> Dropout(id) -> BN."""
    n = len(params)
    h = x
    for i, layer in enumerate(params):
        h = jnp.dot(h, layer["w"].T) + layer["b"][None, :]
        if i < n - 1:
            h = jnp.maximum(h, 0.0)
            if "bn_scale" in layer:
                h = h * layer["bn_scale"][None, :] + layer["bn_shift"][None, :]
    return h


def reference_from_prepared(x, prepared, compute_dtype=jnp.bfloat16):
    """Replicates the kernel's math (BN-folded weights, bf16 matmul inputs, f32 accumulate)."""
    n = len(prepared)
    h = x.astype(compute_dtype)
    for l, p in enumerate(prepared):
        y = jnp.dot(h, p["w"], preferred_element_type=jnp.float32) + p["b"]
        if p["apply_relu"]:
            y = jnp.maximum(y, 0.0)
        h = y.astype(compute_dtype) if l < n - 1 else y
    return h


# ----------------------------------------------------------------------------- main
if __name__ == "__main__":
    key = jax.random.PRNGKey(0)
    key, kx, kp = jax.random.split(key, 3)

    # MultiLayerLinear(num_layers=3, num_features=[32, 64, 48, 16], bias=True,
    #                  activation=nn.ReLU, dropout_p=0.5, batch_norm=True)   [eval mode]
    num_features = (32, 64, 48, 16)
    batch = 32
    compute_dtype = jnp.bfloat16   # bf16 matmul inputs, f32 accumulate + f32 epilogue

    x = jax.random.normal(kx, (batch, num_features[0]), jnp.float32)
    params = init_multi_layer_linear_params(kp, num_features, bias=True, batch_norm=True)
    prepared = prepare_params(params, compute_dtype=compute_dtype)

    out = multi_layer_linear_forward(x, prepared, compute_dtype=compute_dtype)
    out = jax.block_until_ready(out)

    ref_matched = reference_from_prepared(x, prepared, compute_dtype=compute_dtype)
    ref_f32 = multi_layer_linear_reference(x, params)

    assert out.shape == (batch, num_features[-1]), out.shape
    assert jnp.allclose(out, ref_matched, atol=2e-3, rtol=2e-3), "mismatch vs bf16-matched reference"
    assert jnp.allclose(out, ref_f32, atol=5e-2, rtol=5e-2), "mismatch vs f32 reference"

    print("KERNEL_OK")
</pallas_src>

<mosaic_0001>
module attributes {stable_mosaic.version = 11 : i64} {
  func.func @_stack_kernel(%arg0: i32, %arg1: memref<32x32xf32, #tpu.memory_space<vmem>>, %arg2: memref<32x64xbf16, #tpu.memory_space<vmem>>, %arg3: memref<1x64xf32, #tpu.memory_space<vmem>>, %arg4: memref<64x48xbf16, #tpu.memory_space<vmem>>, %arg5: memref<1x48xf32, #tpu.memory_space<vmem>>, %arg6: memref<48x16xbf16, #tpu.memory_space<vmem>>, %arg7: memref<1x16xf32, #tpu.memory_space<vmem>>, %arg8: memref<32x16xf32, #tpu.memory_space<vmem>>) attributes {dimension_semantics = [#tpu.dimension_semantics<parallel>], iteration_bounds = array<i64: 1>, scalar_prefetch = 0 : i64, scratch_operands = 0 : i64, tpu.core_type = #tpu.core_type<tc>, window_params = [{transform_indices = @transform_0, window_bounds = array<i64: 32, 32>}, {pipeline_mode = #tpu.pipeline_mode<synchronous>, transform_indices = @transform_1, window_bounds = array<i64: 32, 64>}, {pipeline_mode = #tpu.pipeline_mode<synchronous>, transform_indices = @transform_2, window_bounds = array<i64: 1, 64>}, {pipeline_mode = #tpu.pipeline_mode<synchronous>, transform_indices = @transform_3, window_bounds = array<i64: 64, 48>}, {pipeline_mode = #tpu.pipeline_mode<synchronous>, transform_indices = @transform_4, window_bounds = array<i64: 1, 48>}, {pipeline_mode = #tpu.pipeline_mode<synchronous>, transform_indices = @transform_5, window_bounds = array<i64: 48, 16>}, {pipeline_mode = #tpu.pipeline_mode<synchronous>, transform_indices = @transform_6, window_bounds = array<i64: 1, 16>}, {transform_indices = @transform_7, window_bounds = array<i64: 32, 16>}]} {
    %c0 = arith.constant 0 : index
    %c0_0 = arith.constant 0 : index
    %0 = vector.load %arg1[%c0, %c0_0] : memref<32x32xf32, #tpu.memory_space<vmem>>, vector<32x32xf32>
    %1 = arith.truncf %0 : vector<32x32xf32> to vector<32x32xbf16>
    %c0_1 = arith.constant 0 : index
    %c0_2 = arith.constant 0 : index
    %2 = vector.load %arg2[%c0_1, %c0_2] : memref<32x64xbf16, #tpu.memory_space<vmem>>, vector<32x64xbf16>
    %c0_3 = arith.constant 0 : index
    %c0_4 = arith.constant 0 : index
    %3 = vector.load %arg3[%c0_3, %c0_4] : memref<1x64xf32, #tpu.memory_space<vmem>>, vector<1x64xf32>
    %cst = arith.constant dense<0.000000e+00> : vector<32x64xf32>
    %4 = tpu.matmul %1, %2, %cst {dimension_numbers = #tpu.dot_dimension_numbers<[1], [0], [0], [1], [0, 0, 1, 1], [], []>} : vector<32x32xbf16>, vector<32x64xbf16>, vector<32x64xf32> -> vector<32x64xf32>
    %5 = vector.broadcast %3 : vector<1x64xf32> to vector<32x64xf32>
    %6 = arith.addf %4, %5 : vector<32x64xf32>
    %cst_5 = arith.constant 0.000000e+00 : f32
    %7 = vector.broadcast %cst_5 : f32 to vector<32x64xf32>
    %8 = arith.maximumf %6, %7 : vector<32x64xf32>
    %9 = arith.truncf %8 : vector<32x64xf32> to vector<32x64xbf16>
    %c0_6 = arith.constant 0 : index
    %c0_7 = arith.constant 0 : index
    %10 = vector.load %arg4[%c0_6, %c0_7] : memref<64x48xbf16, #tpu.memory_space<vmem>>, vector<64x48xbf16>
    %c0_8 = arith.constant 0 : index
    %c0_9 = arith.constant 0 : index
    %11 = vector.load %arg5[%c0_8, %c0_9] : memref<1x48xf32, #tpu.memory_space<vmem>>, vector<1x48xf32>
    %cst_10 = arith.constant dense<0.000000e+00> : vector<32x48xf32>
    %12 = tpu.matmul %9, %10, %cst_10 {dimension_numbers = #tpu.dot_dimension_numbers<[1], [0], [0], [1], [0, 0, 1, 1], [], []>} : vector<32x64xbf16>, vector<64x48xbf16>, vector<32x48xf32> -> vector<32x48xf32>
    %13 = vector.broadcast %11 : vector<1x48xf32> to vector<32x48xf32>
    %14 = arith.addf %12, %13 : vector<32x48xf32>
    %cst_11 = arith.constant 0.000000e+00 : f32
    %15 = vector.broadcast %cst_11 : f32 to vector<32x48xf32>
    %16 = arith.maximumf %14, %15 : vector<32x48xf32>
    %17 = arith.truncf %16 : vector<32x48xf32> to vector<32x48xbf16>
    %c0_12 = arith.constant 0 : index
    %c0_13 = arith.constant 0 : index
    %18 = vector.load %arg6[%c0_12, %c0_13] : memref<48x16xbf16, #tpu.memory_space<vmem>>, vector<48x16xbf16>
    %c0_14 = arith.constant 0 : index
    %c0_15 = arith.constant 0 : index
    %19 = vector.load %arg7[%c0_14, %c0_15] : memref<1x16xf32, #tpu.memory_space<vmem>>, vector<1x16xf32>
    %cst_16 = arith.constant dense<0.000000e+00> : vector<32x16xf32>
    %20 = tpu.matmul %17, %18, %cst_16 {dimension_numbers = #tpu.dot_dimension_numbers<[1], [0], [0], [1], [0, 0, 1, 1], [], []>} : vector<32x48xbf16>, vector<48x16xbf16>, vector<32x16xf32> -> vector<32x16xf32>
    %21 = vector.broadcast %19 : vector<1x16xf32> to vector<32x16xf32>
    %22 = arith.addf %20, %21 : vector<32x16xf32>
    %c0_17 = arith.constant 0 : index
    %c0_18 = arith.constant 0 : index
    %23 = vector.load %arg8[%c0_17, %c0_18] : memref<32x16xf32, #tpu.memory_space<vmem>>, vector<32x16xf32>
    tpu.vector_store %arg8[%c0_17, %c0_18], %22 {strides = array<i32>} : memref<32x16xf32, #tpu.memory_space<vmem>>, vector<32x16xf32>,
    return
  }
  func.func @transform_0(%arg0: i32) -> (i32, i32) {
    %c0_i32 = arith.constant 0 : i32
    %c0_i32_0 = arith.constant 0 : i32
    return %arg0, %c0_i32 : i32, i32
  }
  func.func @transform_1(%arg0: i32) -> (i32, i32) {
    %c0_i32 = arith.constant 0 : i32
    %c0_i32_0 = arith.constant 0 : i32
    %c0_i32_1 = arith.constant 0 : i32
    return %c0_i32, %c0_i32_0 : i32, i32
  }
  func.func @transform_2(%arg0: i32) -> (i32, i32) {
    %c0_i32 = arith.constant 0 : i32
    %c0_i32_0 = arith.constant 0 : i32
    %c0_i32_1 = arith.constant 0 : i32
    return %c0_i32, %c0_i32_0 : i32, i32
  }
  func.func @transform_3(%arg0: i32) -> (i32, i32) {
    %c0_i32 = arith.constant 0 : i32
    %c0_i32_0 = arith.constant 0 : i32
    %c0_i32_1 = arith.constant 0 : i32
    return %c0_i32, %c0_i32_0 : i32, i32
  }
  func.func @transform_4(%arg0: i32) -> (i32, i32) {
    %c0_i32 = arith.constant 0 : i32
    %c0_i32_0 = arith.constant 0 : i32
    %c0_i32_1 = arith.constant 0 : i32
    return %c0_i32, %c0_i32_0 : i32, i32
  }
  func.func @transform_5(%arg0: i32) -> (i32, i32) {
    %c0_i32 = arith.constant 0 : i32
    %c0_i32_0 = arith.constant 0 : i32
    %c0_i32_1 = arith.constant 0 : i32
    return %c0_i32, %c0_i32_0 : i32, i32
  }
  func.func @transform_6(%arg0: i32) -> (i32, i32) {
    %c0_i32 = arith.constant 0 : i32
    %c0_i32_0 = arith.constant 0 : i32
    %c0_i32_1 = arith.constant 0 : i32
    return %c0_i32, %c0_i32_0 : i32, i32
  }
  func.func @transform_7(%arg0: i32) -> (i32, i32) {
    %c0_i32 = arith.constant 0 : i32
    %c0_i32_0 = arith.constant 0 : i32
    return %arg0, %c0_i32 : i32, i32
  }
}

module attributes {stable_mosaic.version = 11 : i64} {
  func.func @_stack_kernel(%arg0: i32, %arg1: memref<32x32xf32, #tpu.memory_space<vmem>>, %arg2: memref<32x64xbf16, #tpu.memory_space<vmem>>, %arg3: memref<1x64xf32, #tpu.memory_space<vmem>>, %arg4: memref<64x48xbf16, #tpu.memory_space<vmem>>, %arg5: memref<1x48xf32, #tpu.memory_space<vmem>>, %arg6: memref<48x16xbf16, #tpu.memory_space<vmem>>, %arg7: memref<1x16xf32, #tpu.memory_space<vmem>>, %arg8: memref<32x16xf32, #tpu.memory_space<vmem>>) attributes {dimension_semantics = [#tpu.dimension_semantics<parallel>], iteration_bounds = array<i64: 1>, scalar_prefetch = 0 : i64, scratch_operands = 0 : i64, tpu.core_type = #tpu.core_type<tc>, window_params = [{transform_indices = @transform_0, window_bounds = array<i64: 32, 32>}, {pipeline_mode = #tpu.pipeline_mode<synchronous>, transform_indices = @transform_1, window_bounds = array<i64: 32, 64>}, {pipeline_mode = #tpu.pipeline_mode<synchronous>, transform_indices = @transform_2, window_bounds = array<i64: 1, 64>}, {pipeline_mode = #tpu.pipeline_mode<synchronous>, transform_indices = @transform_3, window_bounds = array<i64: 64, 48>}, {pipeline_mode = #tpu.pipeline_mode<synchronous>, transform_indices = @transform_4, window_bounds = array<i64: 1, 48>}, {pipeline_mode = #tpu.pipeline_mode<synchronous>, transform_indices = @transform_5, window_bounds = array<i64: 48, 16>}, {pipeline_mode = #tpu.pipeline_mode<synchronous>, transform_indices = @transform_6, window_bounds = array<i64: 1, 16>}, {transform_indices = @transform_7, window_bounds = array<i64: 32, 16>}]} {
    %c0 = arith.constant 0 : index
    %c0_0 = arith.constant 0 : index
    %0 = vector.load %arg1[%c0, %c0_0] : memref<32x32xf32, #tpu.memory_space<vmem>>, vector<32x32xf32>
    %1 = arith.truncf %0 : vector<32x32xf32> to vector<32x32xbf16>
    %c0_1 = arith.constant 0 : index
    %c0_2 = arith.constant 0 : index
    %2 = vector.load %arg2[%c0_1, %c0_2] : memref<32x64xbf16, #tpu.memory_space<vmem>>, vector<32x64xbf16>
    %c0_3 = arith.constant 0 : index
    %c0_4 = arith.constant 0 : index
    %3 = vector.load %arg3[%c0_3, %c0_4] : memref<1x64xf32, #tpu.memory_space<vmem>>, vector<1x64xf32>
    %cst = arith.constant dense<0.000000e+00> : vector<32x64xf32>
    %4 = tpu.matmul %1, %2, %cst {dimension_numbers = #tpu.dot_dimension_numbers<[1], [0], [0], [1], [0, 0, 1, 1], [], []>} : vector<32x32xbf16>, vector<32x64xbf16>, vector<32x64xf32> -> vector<32x64xf32>
    %5 = vector.broadcast %3 : vector<1x64xf32> to vector<32x64xf32>
    %6 = arith.addf %4, %5 : vector<32x64xf32>
    %cst_5 = arith.constant 0.000000e+00 : f32
    %7 = vector.broadcast %cst_5 : f32 to vector<32x64xf32>
    %8 = arith.maximumf %6, %7 : vector<32x64xf32>
    %9 = arith.truncf %8 : vector<32x64xf32> to vector<32x64xbf16>
    %c0_6 = arith.constant 0 : index
    %c0_7 = arith.constant 0 : index
    %10 = vector.load %arg4[%c0_6, %c0_7] : memref<64x48xbf16, #tpu.memory_space<vmem>>, vector<64x48xbf16>
    %c0_8 = arith.constant 0 : index
    %c0_9 = arith.constant 0 : index
    %11 = vector.load %arg5[%c0_8, %c0_9] : memref<1x48xf32, #tpu.memory_space<vmem>>, vector<1x48xf32>
    %cst_10 = arith.constant dense<0.000000e+00> : vector<32x48xf32>
    %12 = tpu.matmul %9, %10, %cst_10 {dimension_numbers = #tpu.dot_dimension_numbers<[1], [0], [0], [1], [0, 0, 1, 1], [], []>} : vector<32x64xbf16>, vector<64x48xbf16>, vector<32x48xf32> -> vector<32x48xf32>
    %13 = vector.broadcast %11 : vector<1x48xf32> to vector<32x48xf32>
    %14 = arith.addf %12, %13 : vector<32x48xf32>
    %cst_11 = arith.constant 0.000000e+00 : f32
    %15 = vector.broadcast %cst_11 : f32 to vector<32x48xf32>
    %16 = arith.maximumf %14, %15 : vector<32x48xf32>
    %17 = arith.truncf %16 : vector<32x48xf32> to vector<32x48xbf16>
    %c0_12 = arith.constant 0 : index
    %c0_13 = arith.constant 0 : index
    %18 = vector.load %arg6[%c0_12, %c0_13] : memref<48x16xbf16, #tpu.memory_space<vmem>>, vector<48x16xbf16>
    %c0_14 = arith.constant 0 : index
    %c0_15 = arith.constant 0 : index
    %19 = vector.load %arg7[%c0_14, %c0_15] : memref<1x16xf32, #tpu.memory_space<vmem>>, vector<1x16xf32>
    %cst_16 = arith.constant dense<0.000000e+00> : vector<32x16xf32>
    %20 = tpu.matmul %17, %18, %cst_16 {dimension_numbers = #tpu.dot_dimension_numbers<[1], [0], [0], [1], [0, 0, 1, 1], [], []>} : vector<32x48xbf16>, vector<48x16xbf16>, vector<32x16xf32> -> vector<32x16xf32>
    %21 = vector.broadcast %19 : vector<1x16xf32> to vector<32x16xf32>
    %22 = arith.addf %20, %21 : vector<32x16xf32>
    %c0_17 = arith.constant 0 : index
    %c0_18 = arith.constant 0 : index
    %23 = vector.load %arg8[%c0_17, %c0_18] : memref<32x16xf32, #tpu.memory_space<vmem>>, vector<32x16xf32>
    tpu.vector_store %arg8[%c0_17, %c0_18], %22 {strides = array<i32>} : memref<32x16xf32, #tpu.memory_space<vmem>>, vector<32x16xf32>,
    return
  }
  func.func @transform_0(%arg0: i32) -> (i32, i32) {
    %c0_i32 = arith.constant 0 : i32
    %c0_i32_0 = arith.constant 0 : i32
    return %arg0, %c0_i32 : i32, i32
  }
  func.func @transform_1(%arg0: i32) -> (i32, i32) {
    %c0_i32 = arith.constant 0 : i32
    %c0_i32_0 = arith.constant 0 : i32
    %c0_i32_1 = arith.constant 0 : i32
    return %c0_i32, %c0_i32_0 : i32, i32
  }
  func.func @transform_2(%arg0: i32) -> (i32, i32) {
    %c0_i32 = arith.constant 0 : i32
    %c0_i32_0 = arith.constant 0 : i32
    %c0_i32_1 = arith.constant 0 : i32
    return %c0_i32, %c0_i32_0 : i32, i32
  }
  func.func @transform_3(%arg0: i32) -> (i32, i32) {
    %c0_i32 = arith.constant 0 : i32
    %c0_i32_0 = arith.constant 0 : i32
    %c0_i32_1 = arith.constant 0 : i32
    return %c0_i32, %c0_i32_0 : i32, i32
  }
  func.func @transform_4(%arg0: i32) -> (i32, i32) {
    %c0_i32 = arith.constant 0 : i32
    %c0_i32_0 = arith.constant 0 : i32
    %c0_i32_1 = arith.constant 0 : i32
    return %c0_i32, %c0_i32_0 : i32, i32
  }
  func.func @transform_5(%arg0: i32) -> (i32, i32) {
    %c0_i32 = arith.constant 0 : i32
    %c0_i32_0 = arith.constant 0 : i32
    %c0_i32_1 = arith.constant 0 : i32
    return %c0_i32, %c0_i32_0 : i32, i32
  }
  func.func @transform_6(%arg0: i32) -> (i32, i32) {
    %c0_i32 = arith.constant 0 : i32
    %c0_i32_0 = arith.constant 0 : i32
    %c0_i32_1 = arith.constant 0 : i32
    return %c0_i32, %c0_i32_0 : i32, i32
  }
  func.func @transform_7(%arg0: i32) -> (i32, i32) {
    %c0_i32 = arith.constant 0 : i32
    %c0_i32_0 = arith.constant 0 : i32
    return %arg0, %c0_i32 : i32, i32
  }
}

</mosaic_0001>

<llo_original>
// kernel: tpu_custom_call.1
$region0: #{tpu_custom_call.1}
  #allocation0 [shape = 'u32[]', space=smem, size = 0x4, offset = 0x4, fixed_abs, tag = 'smem constant byte address 0x4 - core index']
  #allocation1 [shape = 'u32[72,128]{1,0:T(1,128)}', space=vmem, size = 0x9000, scoped, tag = 'internal scratch']
  %s0 = inlined_call_operand.vmem [shape: f32[32,32], index: 0, kind: input, shape index: {}]
  %s1 = inlined_call_operand.vmem [shape: bf16[32,64], index: 1, kind: input, shape index: {}]
  %s2 = inlined_call_operand.vmem [shape: f32[1,64], index: 2, kind: input, shape index: {}]
  %s3 = inlined_call_operand.vmem [shape: bf16[64,48], index: 3, kind: input, shape index: {}]
  %s4 = inlined_call_operand.vmem [shape: f32[1,48], index: 4, kind: input, shape index: {}]
  %s5 = inlined_call_operand.vmem [shape: bf16[48,16], index: 5, kind: input, shape index: {}]
  %s6 = inlined_call_operand.vmem [shape: f32[1,16], index: 6, kind: input, shape index: {}]
  %s7 = inlined_call_operand.vmem [shape: f32[32,16], index: 7, kind: output, shape index: {}]
  %s8 = sld [smem:[#allocation0]]
  $region38: #{tpu_custom_call.1} parent=0
    _
  %s10 = ssub.s32 1, %s8
  %s11 = scalar_select 0, %s10, %s8
  // Predicated region
  $region2: #{tpu_custom_call.1} parent=0 // pred_check
    _
  $region3: #{tpu_custom_call.1} parent=0 // pred_check_branch
    %13 = sbr.rel (0) target = $region5
  $region4: #{tpu_custom_call.1} parent=0 // pred_region
    _
  $region5: #{tpu_custom_call.1} parent=0 // pred_fallthru
    _
  // Predicated region
  $region6: #{tpu_custom_call.1} parent=0 // pred_check
    _
  $region7: #{tpu_custom_call.1} parent=0 // pred_check_branch
    %15 = sbr.rel (0) target = $region9
  $region8: #{tpu_custom_call.1} parent=0 // pred_region
    _
  $region9: #{tpu_custom_call.1} parent=0 // pred_fallthru
    _
  // Predicated region
  $region10: #{tpu_custom_call.1} parent=0 // pred_check
    _
  $region11: #{tpu_custom_call.1} parent=0 // pred_check_branch
    %17 = sbr.rel (0) target = $region13
  $region12: #{tpu_custom_call.1} parent=0 // pred_region
    _
  $region13: #{tpu_custom_call.1} parent=0 // pred_fallthru
    _
  // Predicated region
  $region14: #{tpu_custom_call.1} parent=0 // pred_check
    _
  $region15: #{tpu_custom_call.1} parent=0 // pred_check_branch
    %19 = sbr.rel (0) target = $region17
  $region16: #{tpu_custom_call.1} parent=0 // pred_region
    _
  $region17: #{tpu_custom_call.1} parent=0 // pred_fallthru
    _
  // Predicated region
  $region18: #{tpu_custom_call.1} parent=0 // pred_check
    _
  $region19: #{tpu_custom_call.1} parent=0 // pred_check_branch
    %21 = sbr.rel (0) target = $region21
  $region20: #{tpu_custom_call.1} parent=0 // pred_region
    _
  $region21: #{tpu_custom_call.1} parent=0 // pred_fallthru
    _
  // Predicated region
  $region22: #{tpu_custom_call.1} parent=0 // pred_check
    _
  $region23: #{tpu_custom_call.1} parent=0 // pred_check_branch
    %23 = sbr.rel (0) target = $region25
  $region24: #{tpu_custom_call.1} parent=0 // pred_region
    _
  $region25: #{tpu_custom_call.1} parent=0 // pred_fallthru
    _
  // Predicated region
  $region26: #{tpu_custom_call.1} parent=0 // pred_check
    _
  $region27: #{tpu_custom_call.1} parent=0 // pred_check_branch
    %25 = sbr.rel (0) target = $region29
  $region28: #{tpu_custom_call.1} parent=0 // pred_region
    _
  $region29: #{tpu_custom_call.1} parent=0 // pred_fallthru
    _
  %v27 = vld [vmem:[%s0] sm:$0xff]
  %v28 = vld [vmem:[%s0 + $0x8] sm:$0xff]
  %v29 = vld [vmem:[%s0 + $0x10] sm:$0xff]
  %v30 = vld [vmem:[%s0 + $0x18] sm:$0xff]
  %v31 = vpack.c.bf16 %v28, %v27
  %v32 = vpack.c.bf16 %v30, %v29
  %v33 = vld [vmem:[%s1] sm:$0xf]
  %v34 = vld [vmem:[%s1 + $0x4] sm:$0xf]
  %v35 = vld [vmem:[%s1 + $0x8] sm:$0xf]
  %v36 = vld [vmem:[%s1 + $0xc] sm:$0xf]
  %v37 = vld [vmem:[%s2] sm:$0x1]
  %v39 = vperm.slane %v37, 0
  %v45 = vunpack.c.l.b16 %v33
  %v46 = vunpack.c.l.b16 %v34
  %v47 = vunpack.c.l.b16 %v35
  %v48 = vunpack.c.l.b16 %v36
  %v49 = vpack.c.b16 %v46, %v45
  %v50 = vpack.c.b16 %v48, %v47
  %vm53 = vcmask 261120
  %v55 = vsel %vm53, %v31, 0
  %v58 = vsel %vm53, %v32, 0
  %60 = vmatpush.bf16.msra.mxu0 0
  %61 = vmatpush.bf16.msra.mxu0 0
  %62 = vmatpush.bf16.msra.mxu0 0
  %63 = vmatpush.bf16.msra.mxu0 0
  %64 = vmatpush.bf16.msra.mxu0 0
  %65 = vmatpush.bf16.msra.mxu0 0
  %66 = vmatpush.bf16.msra.mxu0 %v50
  %67 = vmatpush.bf16.msra.mxu0 %v49
  %68 = vmatmul.bf16.gmra.mxu0 %v55
  %v69 = vpop.f32.mrf.mxu0
  %v70 = vadd.f32 %v39, %v69
  %v71 = vpop.f32.mrf.mxu0
  %v72 = vadd.f32 %v39, %v71
  %73 = vmatmul.bf16.gmra.mxu0 %v58
  %v74 = vpop.f32.mrf.mxu0
  %v75 = vadd.f32 %v39, %v74
  %v76 = vpop.f32.mrf.mxu0
  %v77 = vadd.f32 %v39, %v76
  %78 = vdwg.mxu0
  %v79 = vmax.f32 %v70, 0.0
  %v80 = vmax.f32 %v72, 0.0
  %v81 = vmax.f32 %v75, 0.0
  %v82 = vmax.f32 %v77, 0.0
  %v83 = vpack.c.bf16 %v80, %v79
  %v84 = vpack.c.bf16 %v82, %v81
  %v85 = vld [vmem:[%s3] sm:$0xf]
  %v86 = vld [vmem:[%s3 + $0x4] sm:$0xf]
  %v87 = vld [vmem:[%s3 + $0x8] sm:$0xf]
  %v88 = vld [vmem:[%s3 + $0xc] sm:$0xf]
  %v89 = vld [vmem:[%s3 + $0x10] sm:$0xf]
  %v90 = vld [vmem:[%s3 + $0x14] sm:$0xf]
  %v91 = vld [vmem:[%s3 + $0x18] sm:$0xf]
  %v92 = vld [vmem:[%s3 + $0x1c] sm:$0xf]
  %v93 = vld [vmem:[%s4] sm:$0x1]
  %v95 = vperm.slane %v93, 0
  %v105 = vunpack.c.l.b16 %v85
  %v106 = vunpack.c.l.b16 %v86
  %v107 = vunpack.c.l.b16 %v87
  %v108 = vunpack.c.l.b16 %v88
  %v109 = vunpack.c.l.b16 %v89
  %v110 = vunpack.c.l.b16 %v90
  %v111 = vunpack.c.l.b16 %v91
  %v112 = vunpack.c.l.b16 %v92
  %v113 = vpack.c.b16 %v106, %v105
  %v114 = vpack.c.b16 %v108, %v107
  %v115 = vpack.c.b16 %v110, %v109
  %v116 = vpack.c.b16 %v112, %v111
  %vm121 = vcmask 523264
  %v123 = vsel %vm121, %v83, 0
  %v126 = vsel %vm121, %v84, 0
  %128 = vmatpush.bf16.msra.mxu0 0
  %129 = vmatpush.bf16.msra.mxu0 0
  %130 = vmatpush.bf16.msra.mxu0 0
  %131 = vmatpush.bf16.msra.mxu0 0
  %132 = vmatpush.bf16.msra.mxu0 %v116
  %133 = vmatpush.bf16.msra.mxu0 %v115
  %134 = vmatpush.bf16.msra.mxu0 %v114
  %135 = vmatpush.bf16.msra.mxu0 %v113
  %136 = vmatmul.bf16.gmra.mxu0 %v123
  %v137 = vpop.f32.mrf.mxu0
  %v138 = vadd.f32 %v95, %v137
  %v139 = vpop.f32.mrf.mxu0
  %v140 = vadd.f32 %v95, %v139
  %141 = vmatmul.bf16.gmra.mxu0 %v126
  %v142 = vpop.f32.mrf.mxu0
  %v143 = vadd.f32 %v95, %v142
  %v144 = vpop.f32.mrf.mxu0
  %v145 = vadd.f32 %v95, %v144
  %146 = vdwg.mxu0
  %v147 = vmax.f32 %v138, 0.0
  %v148 = vmax.f32 %v140, 0.0
  %v149 = vmax.f32 %v143, 0.0
  %v150 = vmax.f32 %v145, 0.0
  %v151 = vpack.c.bf16 %v148, %v147
  %v152 = vpack.c.bf16 %v150, %v149
  %v153 = vld [vmem:[%s5] sm:$0xf]
  %v154 = vld [vmem:[%s5 + $0x4] sm:$0xf]
  %v155 = vld [vmem:[%s5 + $0x8] sm:$0xf]
  %v156 = vld [vmem:[%s5 + $0xc] sm:$0xf]
  %v157 = vld [vmem:[%s5 + $0x10] sm:$0xf]
  %v158 = vld [vmem:[%s5 + $0x14] sm:$0xf]
  %v159 = vld [vmem:[%s6] sm:$0x1]
  %v161 = vperm.slane %v159, 0
  %v169 = vunpack.c.l.b16 %v153
  %v170 = vunpack.c.l.b16 %v154
  %v171 = vunpack.c.l.b16 %v155
  %v172 = vunpack.c.l.b16 %v156
  %v173 = vunpack.c.l.b16 %v157
  %v174 = vunpack.c.l.b16 %v158
  %v175 = vpack.c.b16 %v170, %v169
  %v176 = vpack.c.b16 %v172, %v171
  %v177 = vpack.c.b16 %v174, %v173
  %vm181 = vcmask 392192
  %v183 = vsel %vm181, %v151, 0
  %v186 = vsel %vm181, %v152, 0
  %188 = vmatpush.bf16.msra.mxu0 0
  %189 = vmatpush.bf16.msra.mxu0 0
  %190 = vmatpush.bf16.msra.mxu0 0
  %191 = vmatpush.bf16.msra.mxu0 0
  %192 = vmatpush.bf16.msra.mxu0 0
  %193 = vmatpush.bf16.msra.mxu0 %v177
  %194 = vmatpush.bf16.msra.mxu0 %v176
  %195 = vmatpush.bf16.msra.mxu0 %v175
  %196 = vmatmul.bf16.gmra.mxu0 %v183
  %v197 = vpop.f32.mrf.mxu0
  %v198 = vadd.f32 %v161, %v197
  %v199 = vpop.f32.mrf.mxu0
  %v200 = vadd.f32 %v161, %v199
  %201 = vmatmul.bf16.gmra.mxu0 %v186
  %v202 = vpop.f32.mrf.mxu0
  %v203 = vadd.f32 %v161, %v202
  %v204 = vpop.f32.mrf.mxu0
  %v205 = vadd.f32 %v161, %v204
  %206 = vdwg.mxu0
  %vm207 = vcmask 130048
  %208 = vst.msk [vmem:[%s7] sm:$0xff] %vm207, %v198
  %209 = vst.msk [vmem:[%s7 + $0x8] sm:$0xff] %vm207, %v200
  %210 = vst.msk [vmem:[%s7 + $0x10] sm:$0xff] %vm207, %v203
  %211 = vst.msk [vmem:[%s7 + $0x18] sm:$0xff] %vm207, %v205
  // Predicated region
  $region30: #{tpu_custom_call.1} parent=0 // pred_check
    _
  $region31: #{tpu_custom_call.1} parent=0 // pred_check_branch
    %213 = sbr.rel (0) target = $region33
  $region32: #{tpu_custom_call.1} parent=0 // pred_region
    _
  $region33: #{tpu_custom_call.1} parent=0 // pred_fallthru
    _
  // Predicated region
  $region34: #{tpu_custom_call.1} parent=0 // pred_check
    _
  $region35: #{tpu_custom_call.1} parent=0 // pred_check_branch
    %215 = sbr.rel (0) target = $region37
  $region36: #{tpu_custom_call.1} parent=0 // pred_region
    _
  $region37: #{tpu_custom_call.1} parent=0 // pred_fallthru
    _

// kernel: tpu_custom_call.1
$region0: #{tpu_custom_call.1}
  #allocation0 [shape = 'u32[]', space=smem, size = 0x4, offset = 0x4, fixed_abs, tag = 'smem constant byte address 0x4 - core index']
  #allocation1 [shape = 'u32[72,128]{1,0:T(1,128)}', space=vmem, size = 0x9000, scoped, tag = 'internal scratch']
  %s0 = inlined_call_operand.vmem [shape: f32[32,32], index: 0, kind: input, shape index: {}]
  %s1 = inlined_call_operand.vmem [shape: bf16[32,64], index: 1, kind: input, shape index: {}]
  %s2 = inlined_call_operand.vmem [shape: f32[1,64], index: 2, kind: input, shape index: {}]
  %s3 = inlined_call_operand.vmem [shape: bf16[64,48], index: 3, kind: input, shape index: {}]
  %s4 = inlined_call_operand.vmem [shape: f32[1,48], index: 4, kind: input, shape index: {}]
  %s5 = inlined_call_operand.vmem [shape: bf16[48,16], index: 5, kind: input, shape index: {}]
  %s6 = inlined_call_operand.vmem [shape: f32[1,16], index: 6, kind: input, shape index: {}]
  %s7 = inlined_call_operand.vmem [shape: f32[32,16], index: 7, kind: output, shape index: {}]
  %s8 = sld [smem:[#allocation0]]
  $region38: #{tpu_custom_call.1} parent=0
    _
  %s10 = ssub.s32 1, %s8
  %s11 = scalar_select 0, %s10, %s8
  // Predicated region
  $region2: #{tpu_custom_call.1} parent=0 // pred_check
    _
  $region3: #{tpu_custom_call.1} parent=0 // pred_check_branch
    %13 = sbr.rel (0) target = $region5
  $region4: #{tpu_custom_call.1} parent=0 // pred_region
    _
  $region5: #{tpu_custom_call.1} parent=0 // pred_fallthru
    _
  // Predicated region
  $region6: #{tpu_custom_call.1} parent=0 // pred_check
    _
  $region7: #{tpu_custom_call.1} parent=0 // pred_check_branch
    %15 = sbr.rel (0) target = $region9
  $region8: #{tpu_custom_call.1} parent=0 // pred_region
    _
  $region9: #{tpu_custom_call.1} parent=0 // pred_fallthru
    _
  // Predicated region
  $region10: #{tpu_custom_call.1} parent=0 // pred_check
    _
  $region11: #{tpu_custom_call.1} parent=0 // pred_check_branch
    %17 = sbr.rel (0) target = $region13
  $region12: #{tpu_custom_call.1} parent=0 // pred_region
    _
  $region13: #{tpu_custom_call.1} parent=0 // pred_fallthru
    _
  // Predicated region
  $region14: #{tpu_custom_call.1} parent=0 // pred_check
    _
  $region15: #{tpu_custom_call.1} parent=0 // pred_check_branch
    %19 = sbr.rel (0) target = $region17
  $region16: #{tpu_custom_call.1} parent=0 // pred_region
    _
  $region17: #{tpu_custom_call.1} parent=0 // pred_fallthru
    _
  // Predicated region
  $region18: #{tpu_custom_call.1} parent=0 // pred_check
    _
  $region19: #{tpu_custom_call.1} parent=0 // pred_check_branch
    %21 = sbr.rel (0) target = $region21
  $region20: #{tpu_custom_call.1} parent=0 // pred_region
    _
  $region21: #{tpu_custom_call.1} parent=0 // pred_fallthru
    _
  // Predicated region
  $region22: #{tpu_custom_call.1} parent=0 // pred_check
    _
  $region23: #{tpu_custom_call.1} parent=0 // pred_check_branch
    %23 = sbr.rel (0) target = $region25
  $region24: #{tpu_custom_call.1} parent=0 // pred_region
    _
  $region25: #{tpu_custom_call.1} parent=0 // pred_fallthru
    _
  // Predicated region
  $region26: #{tpu_custom_call.1} parent=0 // pred_check
    _
  $region27: #{tpu_custom_call.1} parent=0 // pred_check_branch
    %25 = sbr.rel (0) target = $region29
  $region28: #{tpu_custom_call.1} parent=0 // pred_region
    _
  $region29: #{tpu_custom_call.1} parent=0 // pred_fallthru
    _
  %v27 = vld [vmem:[%s0] sm:$0xff]
  %v28 = vld [vmem:[%s0 + $0x8] sm:$0xff]
  %v29 = vld [vmem:[%s0 + $0x10] sm:$0xff]
  %v30 = vld [vmem:[%s0 + $0x18] sm:$0xff]
  %v31 = vpack.c.bf16 %v28, %v27
  %v32 = vpack.c.bf16 %v30, %v29
  %v33 = vld [vmem:[%s1] sm:$0xf]
  %v34 = vld [vmem:[%s1 + $0x4] sm:$0xf]
  %v35 = vld [vmem:[%s1 + $0x8] sm:$0xf]
  %v36 = vld [vmem:[%s1 + $0xc] sm:$0xf]
  %v37 = vld [vmem:[%s2] sm:$0x1]
  %v39 = vperm.slane %v37, 0
  %v45 = vunpack.c.l.b16 %v33
  %v46 = vunpack.c.l.b16 %v34
  %v47 = vunpack.c.l.b16 %v35
  %v48 = vunpack.c.l.b16 %v36
  %v49 = vpack.c.b16 %v46, %v45
  %v50 = vpack.c.b16 %v48, %v47
  %vm53 = vcmask 261120
  %v55 = vsel %vm53, %v31, 0
  %v58 = vsel %vm53, %v32, 0
  %60 = vmatpush.bf16.msra.mxu0 0
  %61 = vmatpush.bf16.msra.mxu0 0
  %62 = vmatpush.bf16.msra.mxu0 0
  %63 = vmatpush.bf16.msra.mxu0 0
  %64 = vmatpush.bf16.msra.mxu0 0
  %65 = vmatpush.bf16.msra.mxu0 0
  %66 = vmatpush.bf16.msra.mxu0 %v50
  %67 = vmatpush.bf16.msra.mxu0 %v49
  %68 = vmatmul.bf16.gmra.mxu0 %v55
  %v69 = vpop.f32.mrf.mxu0
  %v70 = vadd.f32 %v39, %v69
  %v71 = vpop.f32.mrf.mxu0
  %v72 = vadd.f32 %v39, %v71
  %73 = vmatmul.bf16.gmra.mxu0 %v58
  %v74 = vpop.f32.mrf.mxu0
  %v75 = vadd.f32 %v39, %v74
  %v76 = vpop.f32.mrf.mxu0
  %v77 = vadd.f32 %v39, %v76
  %78 = vdwg.mxu0
  %v79 = vmax.f32 %v70, 0.0
  %v80 = vmax.f32 %v72, 0.0
  %v81 = vmax.f32 %v75, 0.0
  %v82 = vmax.f32 %v77, 0.0
  %v83 = vpack.c.bf16 %v80, %v79
  %v84 = vpack.c.bf16 %v82, %v81
  %v85 = vld [vmem:[%s3] sm:$0xf]
  %v86 = vld [vmem:[%s3 + $0x4] sm:$0xf]
  %v87 = vld [vmem:[%s3 + $0x8] sm:$0xf]
  %v88 = vld [vmem:[%s3 + $0xc] sm:$0xf]
  %v89 = vld [vmem:[%s3 + $0x10] sm:$0xf]
  %v90 = vld [vmem:[%s3 + $0x14] sm:$0xf]
  %v91 = vld [vmem:[%s3 + $0x18] sm:$0xf]
  %v92 = vld [vmem:[%s3 + $0x1c] sm:$0xf]
  %v93 = vld [vmem:[%s4] sm:$0x1]
  %v95 = vperm.slane %v93, 0
  %v105 = vunpack.c.l.b16 %v85
  %v106 = vunpack.c.l.b16 %v86
  %v107 = vunpack.c.l.b16 %v87
  %v108 = vunpack.c.l.b16 %v88
  %v109 = vunpack.c.l.b16 %v89
  %v110 = vunpack.c.l.b16 %v90
  %v111 = vunpack.c.l.b16 %v91
  %v112 = vunpack.c.l.b16 %v92
  %v113 = vpack.c.b16 %v106, %v105
  %v114 = vpack.c.b16 %v108, %v107
  %v115 = vpack.c.b16 %v110, %v109
  %v116 = vpack.c.b16 %v112, %v111
  %vm121 = vcmask 523264
  %v123 = vsel %vm121, %v83, 0
  %v126 = vsel %vm121, %v84, 0
  %128 = vmatpush.bf16.msra.mxu0 0
  %129 = vmatpush.bf16.msra.mxu0 0
  %130 = vmatpush.bf16.msra.mxu0 0
  %131 = vmatpush.bf16.msra.mxu0 0
  %132 = vmatpush.bf16.msra.mxu0 %v116
  %133 = vmatpush.bf16.msra.mxu0 %v115
  %134 = vmatpush.bf16.msra.mxu0 %v114
  %135 = vmatpush.bf16.msra.mxu0 %v113
  %136 = vmatmul.bf16.gmra.mxu0 %v123
  %v137 = vpop.f32.mrf.mxu0
  %v138 = vadd.f32 %v95, %v137
  %v139 = vpop.f32.mrf.mxu0
  %v140 = vadd.f32 %v95, %v139
  %141 = vmatmul.bf16.gmra.mxu0 %v126
  %v142 = vpop.f32.mrf.mxu0
  %v143 = vadd.f32 %v95, %v142
  %v144 = vpop.f32.mrf.mxu0
  %v145 = vadd.f32 %v95, %v144
  %146 = vdwg.mxu0
  %v147 = vmax.f32 %v138, 0.0
  %v148 = vmax.f32 %v140, 0.0
  %v149 = vmax.f32 %v143, 0.0
  %v150 = vmax.f32 %v145, 0.0
  %v151 = vpack.c.bf16 %v148, %v147
  %v152 = vpack.c.bf16 %v150, %v149
  %v153 = vld [vmem:[%s5] sm:$0xf]
  %v154 = vld [vmem:[%s5 + $0x4] sm:$0xf]
  %v155 = vld [vmem:[%s5 + $0x8] sm:$0xf]
  %v156 = vld [vmem:[%s5 + $0xc] sm:$0xf]
  %v157 = vld [vmem:[%s5 + $0x10] sm:$0xf]
  %v158 = vld [vmem:[%s5 + $0x14] sm:$0xf]
  %v159 = vld [vmem:[%s6] sm:$0x1]
  %v161 = vperm.slane %v159, 0
  %v169 = vunpack.c.l.b16 %v153
  %v170 = vunpack.c.l.b16 %v154
  %v171 = vunpack.c.l.b16 %v155
  %v172 = vunpack.c.l.b16 %v156
  %v173 = vunpack.c.l.b16 %v157
  %v174 = vunpack.c.l.b16 %v158
  %v175 = vpack.c.b16 %v170, %v169
  %v176 = vpack.c.b16 %v172, %v171
  %v177 = vpack.c.b16 %v174, %v173
  %vm181 = vcmask 392192
  %v183 = vsel %vm181, %v151, 0
  %v186 = vsel %vm181, %v152, 0
  %188 = vmatpush.bf16.msra.mxu0 0
  %189 = vmatpush.bf16.msra.mxu0 0
  %190 = vmatpush.bf16.msra.mxu0 0
  %191 = vmatpush.bf16.msra.mxu0 0
  %192 = vmatpush.bf16.msra.mxu0 0
  %193 = vmatpush.bf16.msra.mxu0 %v177
  %194 = vmatpush.bf16.msra.mxu0 %v176
  %195 = vmatpush.bf16.msra.mxu0 %v175
  %196 = vmatmul.bf16.gmra.mxu0 %v183
  %v197 = vpop.f32.mrf.mxu0
  %v198 = vadd.f32 %v161, %v197
  %v199 = vpop.f32.mrf.mxu0
  %v200 = vadd.f32 %v161, %v199
  %201 = vmatmul.bf16.gmra.mxu0 %v186
  %v202 = vpop.f32.mrf.mxu0
  %v203 = vadd.f32 %v161, %v202
  %v204 = vpop.f32.mrf.mxu0
  %v205 = vadd.f32 %v161, %v204
  %206 = vdwg.mxu0
  %vm207 = vcmask 130048
  %208 = vst.msk [vmem:[%s7] sm:$0xff] %vm207, %v198
  %209 = vst.msk [vmem:[%s7 + $0x8] sm:$0xff] %vm207, %v200
  %210 = vst.msk [vmem:[%s7 + $0x10] sm:$0xff] %vm207, %v203
  %211 = vst.msk [vmem:[%s7 + $0x18] sm:$0xff] %vm207, %v205
  // Predicated region
  $region30: #{tpu_custom_call.1} parent=0 // pred_check
    _
  $region31: #{tpu_custom_call.1} parent=0 // pred_check_branch
    %213 = sbr.rel (0) target = $region33
  $region32: #{tpu_custom_call.1} parent=0 // pred_region
    _
  $region33: #{tpu_custom_call.1} parent=0 // pred_fallthru
    _
  // Predicated region
  $region34: #{tpu_custom_call.1} parent=0 // pred_check
    _
  $region35: #{tpu_custom_call.1} parent=0 // pred_check_branch
    %215 = sbr.rel (0) target = $region37
  $region36: #{tpu_custom_call.1} parent=0 // pred_region
    _
  $region37: #{tpu_custom_call.1} parent=0 // pred_fallthru
    _

</llo_original>
